<compile_context>
chip_gen: v7x
topology: tpu7x:2x2x1
jax: 0.10.0
libtpu: 0.0.40
codegen_flags: <defaults>
</compile_context>

<pallas_src>
import jax
import jax.numpy as jnp
from jax.experimental import pallas as pl
from jax.experimental.pallas import tpu as pltpu


def _round_up(n: int, m: int) -> int:
    return ((n + m - 1) // m) * m


def dynamicnet_kernel(x_ref, w_ref, b_ref, out_ref):
    # Fused linear: logits = x @ (W1^T @ W2^T) + (b1 @ W2^T + b2)
    logits = jnp.dot(x_ref[...], w_ref[...],
                     preferred_element_type=jnp.float32) + b_ref[...]

    # Softmax over the last axis (torch F.softmax dim=1 for a 2D input).
    m = jnp.max(logits, axis=-1, keepdims=True)
    e = jnp.exp(logits - m)
    denom = jnp.sum(e, axis=-1, keepdims=True)
    out_ref[...] = (e / denom).astype(out_ref.dtype)   # exact divide: rows sum to 1


def prepare_params(w1, b1, w2, b2):
    """One-time host-side fusion of the two activation-free linear layers (f32)."""
    w1 = w1.astype(jnp.float32)
    b1 = b1.astype(jnp.float32)
    w2 = w2.astype(jnp.float32)
    b2 = b2.astype(jnp.float32)
    # y = (x @ W1^T + b1) @ W2^T + b2 = x @ (W1^T @ W2^T) + (b1 @ W2^T + b2)
    w_fused = jnp.dot(w1.T, w2.T, precision=jax.lax.Precision.HIGHEST)          # [D_in, D_out]
    b_fused = (jnp.dot(b1, w2.T, precision=jax.lax.Precision.HIGHEST)
               + b2).reshape(1, -1)                                               # [1, D_out]
    return w_fused, b_fused


def dynamicnet_forward(x, w_fused, b_fused, *, max_batch_tile=512):
    """x: [B, D_in] float32. w_fused/b_fused from prepare_params (call once)."""
    B, D_in = x.shape
    D_out = w_fused.shape[1]
    x = x.astype(jnp.float32)

    # Batch tile: aim for >= 4 grid steps so DMA-in/out double-buffers and both v7x
    # TensorCores get work; multiple of 8 sublanes; capped so the live VMEM set stays
    # small on every generation (v5e/v6e 128 MiB, v7x 64 MiB).
    tb = min(max_batch_tile, max(8, _round_up(pl.cdiv(B, 4), 8)))
    grid = (pl.cdiv(B, tb),)     # partial boundary block handled (masked) by Pallas

    cost = pl.CostEstimate(
        flops=2 * B * D_in * D_out,
        transcendentals=B * D_out,                       # exp per logit
        bytes_accessed=(B * D_in * 4                     # x
                        + D_in * D_out * 4               # fused weight
                        + D_out * 4                      # fused bias
                        + B * D_out * 4),                # output
    )

    return pl.pallas_call(
        dynamicnet_kernel,
        out_shape=jax.ShapeDtypeStruct((B, D_out), jnp.float32),
        grid=grid,
        in_specs=[
            pl.BlockSpec((tb, D_in), lambda i: (i, 0)),       # x: streamed over batch
            pl.BlockSpec((D_in, D_out), lambda i: (0, 0)),    # fused weight: VMEM-resident
            pl.BlockSpec((1, D_out), lambda i: (0, 0)),       # fused bias:   VMEM-resident
        ],
        out_specs=pl.BlockSpec((tb, D_out), lambda i: (i, 0)),
        compiler_params=pltpu.CompilerParams(
            dimension_semantics=("parallel",),
        ),
        cost_estimate=cost,
    )(x, w_fused, b_fused)


def reference_forward(x, w1, b1, w2, b2):
    """Pure-JAX f32 reference matching the PyTorch two-stage forward."""
    h = jnp.dot(x, w1.T, precision=jax.lax.Precision.HIGHEST) + b1
    logits = jnp.dot(h, w2.T, precision=jax.lax.Precision.HIGHEST) + b2
    return jax.nn.softmax(logits, axis=-1)


if __name__ == "__main__":
    # Small shapes consistent with DynamicNet(D_in, H, D_out)
    B, D_in, H, D_out = 8, 16, 32, 8

    key = jax.random.PRNGKey(0)
    kx, kw1, kb1, kw2, kb2 = jax.random.split(key, 5)

    x = jax.random.normal(kx, (B, D_in), dtype=jnp.float32)

    # Deterministic parameter init (mimicking torch.nn.Linear uniform fan-in init)
    lim1 = 1.0 / jnp.sqrt(jnp.float32(D_in))
    w1 = jax.random.uniform(kw1, (H, D_in), jnp.float32, -lim1, lim1)
    b1 = jax.random.uniform(kb1, (H,), jnp.float32, -lim1, lim1)
    lim2 = 1.0 / jnp.sqrt(jnp.float32(H))
    w2 = jax.random.uniform(kw2, (D_out, H), jnp.float32, -lim2, lim2)
    b2 = jax.random.uniform(kb2, (D_out,), jnp.float32, -lim2, lim2)

    # One-time host-side fusion, then the forward call.
    w_fused, b_fused = prepare_params(w1, b1, w2, b2)
    y = dynamicnet_forward(x, w_fused, b_fused)
    y = jax.block_until_ready(y)

    y_ref = reference_forward(x, w1, b1, w2, b2)
    assert y.shape == (B, D_out)
    assert jnp.allclose(y, y_ref, atol=1e-4, rtol=1e-3), "mismatch vs reference"
    # softmax rows sum to 1 (exact division in-kernel)
    assert jnp.allclose(jnp.sum(y, axis=-1), jnp.ones((B,), jnp.float32), atol=1e-4)

    print("KERNEL_OK")
</pallas_src>

<mosaic_0001>
module attributes {stable_mosaic.version = 11 : i64} {
  func.func @dynamicnet_kernel(%arg0: i32, %arg1: memref<8x16xf32, #tpu.memory_space<vmem>>, %arg2: memref<16x8xf32, #tpu.memory_space<vmem>>, %arg3: memref<1x8xf32, #tpu.memory_space<vmem>>, %arg4: memref<8x8xf32, #tpu.memory_space<vmem>>) attributes {dimension_semantics = [#tpu.dimension_semantics<parallel>], iteration_bounds = array<i64: 1>, scalar_prefetch = 0 : i64, scratch_operands = 0 : i64, tpu.core_type = #tpu.core_type<tc>, window_params = [{transform_indices = @transform_0, window_bounds = array<i64: 8, 16>}, {pipeline_mode = #tpu.pipeline_mode<synchronous>, transform_indices = @transform_1, window_bounds = array<i64: 16, 8>}, {pipeline_mode = #tpu.pipeline_mode<synchronous>, transform_indices = @transform_2, window_bounds = array<i64: 1, 8>}, {transform_indices = @transform_3, window_bounds = array<i64: 8, 8>}]} {
    %c0 = arith.constant 0 : index
    %c0_0 = arith.constant 0 : index
    %0 = vector.load %arg1[%c0, %c0_0] : memref<8x16xf32, #tpu.memory_space<vmem>>, vector<8x16xf32>
    %c0_1 = arith.constant 0 : index
    %c0_2 = arith.constant 0 : index
    %1 = vector.load %arg2[%c0_1, %c0_2] : memref<16x8xf32, #tpu.memory_space<vmem>>, vector<16x8xf32>
    %cst = arith.constant dense<0.000000e+00> : vector<8x8xf32>
    %2 = tpu.matmul %0, %1, %cst {dimension_numbers = #tpu.dot_dimension_numbers<[1], [0], [0], [1], [0, 0, 1, 1], [], []>} : vector<8x16xf32>, vector<16x8xf32>, vector<8x8xf32> -> vector<8x8xf32>
    %c0_3 = arith.constant 0 : index
    %c0_4 = arith.constant 0 : index
    %3 = vector.load %arg3[%c0_3, %c0_4] : memref<1x8xf32, #tpu.memory_space<vmem>>, vector<1x8xf32>
    %4 = vector.broadcast %3 : vector<1x8xf32> to vector<8x8xf32>
    %5 = arith.addf %2, %4 : vector<8x8xf32>
    %cst_5 = arith.constant dense<0xFF800000> : vector<8xf32>
    %6 = vector.multi_reduction <maximumf>, %5, %cst_5 [1] : vector<8x8xf32> to vector<8xf32>
    %7 = vector.shape_cast %6 : vector<8xf32> to vector<8x1xf32>
    %8 = vector.broadcast %7 : vector<8x1xf32> to vector<8x8xf32>
    %9 = arith.subf %5, %8 : vector<8x8xf32>
    %10 = math.exp %9 : vector<8x8xf32>
    %cst_6 = arith.constant dense<0.000000e+00> : vector<8xf32>
    %11 = vector.multi_reduction <add>, %10, %cst_6 [1] : vector<8x8xf32> to vector<8xf32>
    %12 = vector.shape_cast %11 : vector<8xf32> to vector<8x1xf32>
    %13 = vector.broadcast %12 : vector<8x1xf32> to vector<8x8xf32>
    %14 = arith.divf %10, %13 : vector<8x8xf32>
    %c0_7 = arith.constant 0 : index
    %c0_8 = arith.constant 0 : index
    %15 = vector.load %arg4[%c0_7, %c0_8] : memref<8x8xf32, #tpu.memory_space<vmem>>, vector<8x8xf32>
    tpu.vector_store %arg4[%c0_7, %c0_8], %14 {strides = array<i32>} : memref<8x8xf32, #tpu.memory_space<vmem>>, vector<8x8xf32>,
    return
  }
  func.func @transform_0(%arg0: i32) -> (i32, i32) {
    %c0_i32 = arith.constant 0 : i32
    %c0_i32_0 = arith.constant 0 : i32
    return %arg0, %c0_i32 : i32, i32
  }
  func.func @transform_1(%arg0: i32) -> (i32, i32) {
    %c0_i32 = arith.constant 0 : i32
    %c0_i32_0 = arith.constant 0 : i32
    %c0_i32_1 = arith.constant 0 : i32
    return %c0_i32, %c0_i32_0 : i32, i32
  }
  func.func @transform_2(%arg0: i32) -> (i32, i32) {
    %c0_i32 = arith.constant 0 : i32
    %c0_i32_0 = arith.constant 0 : i32
    %c0_i32_1 = arith.constant 0 : i32
    return %c0_i32, %c0_i32_0 : i32, i32
  }
  func.func @transform_3(%arg0: i32) -> (i32, i32) {
    %c0_i32 = arith.constant 0 : i32
    %c0_i32_0 = arith.constant 0 : i32
    return %arg0, %c0_i32 : i32, i32
  }
}

</mosaic_0001>

<llo_original>
// kernel: tpu_custom_call.1
$region0: #{tpu_custom_call.1}
  #allocation0 [shape = 'u32[]', space=smem, size = 0x4, offset = 0x4, fixed_abs, tag = 'smem constant byte address 0x4 - core index']
  #allocation1 [shape = 'u32[144,128]{1,0:T(1,128)}', space=vmem, size = 0x12000, scoped, tag = 'internal scratch']
  %s0 = inlined_call_operand.vmem [shape: f32[8,16], index: 0, kind: input, shape index: {}]
  %s1 = inlined_call_operand.vmem [shape: f32[16,8], index: 1, kind: input, shape index: {}]
  %s2 = inlined_call_operand.vmem [shape: f32[1,8], index: 2, kind: input, shape index: {}]
  %s3 = inlined_call_operand.hbm [shape: f32[8,8], index: 3, kind: output, shape index: {}]
  %s4 = sld [smem:[#allocation0]]
  $region22: #{tpu_custom_call.1} parent=0
    _
  %s6 = ssub.s32 1, %s4
  %s7 = scalar_select 0, %s6, %s4
  $region1: #{tpu_custom_call.1} parent=0
    #allocation2 [shape = 'u8[4096]{0}', space=vmem, size = 0x1000, scoped, tag = 'output window, operand 0, single buffered']
    #allocation3 [shape = 's32[1]{0}', space=sflag, size = 0x4, scoped, tag = 'scoped memory for tpu_custom_call.1']
    %8 = vsyncpa [#allocation3], 0
    // Predicated region
    $region2: #{tpu_custom_call.1} parent=1 // pred_check
      _
    $region3: #{tpu_custom_call.1} parent=1 // pred_check_branch
      %10 = sbr.rel (0) target = $region5
    $region4: #{tpu_custom_call.1} parent=1 // pred_region
      _
    $region5: #{tpu_custom_call.1} parent=1 // pred_fallthru
      _
    // Predicated region
    $region6: #{tpu_custom_call.1} parent=1 // pred_check
      _
    $region7: #{tpu_custom_call.1} parent=1 // pred_check_branch
      %12 = sbr.rel (0) target = $region9
    $region8: #{tpu_custom_call.1} parent=1 // pred_region
      _
    $region9: #{tpu_custom_call.1} parent=1 // pred_fallthru
      _
    // Predicated region
    $region10: #{tpu_custom_call.1} parent=1 // pred_check
      _
    $region11: #{tpu_custom_call.1} parent=1 // pred_check_branch
      %14 = sbr.rel (0) target = $region13
    $region12: #{tpu_custom_call.1} parent=1 // pred_region
      _
    $region13: #{tpu_custom_call.1} parent=1 // pred_fallthru
      _
    %v15 = vld [vmem:[%s0] sm:$0xff]
    %v16 = vld [vmem:[%s1] sm:$0xff]
    %v17 = vld [vmem:[%s1 + $0x8] sm:$0xff]
    %v18 = vld [vmem:[%s2] sm:$0x1]
    %v20 = vlaneseq
    %v21 = vshrl.u32 %v20, 7
    %v22 = vsub.s32 0, %v21
    %v23 = vrot.slane %v18, %v22
    %vm25 = vcmask 130048
    %v27 = vsel %vm25, %v15, 0
    %29 = vmatprep.subr.mxu0 0.0
    %30 = vmatpush1.msra.mxu0 %v16
    %31 = vmatprep.subr.mxu0 0.0
    %32 = vmatpush1.msra.mxu0 %v17
    %33 = vmatprep.subr.mxu0 0.0
    %34 = vmatpush1.msra.mxu0 0.0
    %35 = vmatprep.subr.mxu0 0.0
    %36 = vmatpush1.msra.mxu0 0.0
    %37 = vmatprep.subr.mxu0 0.0
    %38 = vmatpush1.msra.mxu0 0.0
    %39 = vmatprep.subr.mxu0 0.0
    %40 = vmatpush1.msra.mxu0 0.0
    %41 = vmatprep.subr.mxu0 0.0
    %42 = vmatpush1.msra.mxu0 0.0
    %43 = vmatprep.subr.mxu0 0.0
    %44 = vmatpush1.msra.mxu0 0.0
    %45 = vmatprep.subr.mxu0 0.0
    %46 = vmatpush1.msra.mxu0 0.0
    %47 = vmatprep.subr.mxu0 0.0
    %48 = vmatpush1.msra.mxu0 0.0
    %49 = vmatprep.subr.mxu0 0.0
    %50 = vmatpush1.msra.mxu0 0.0
    %51 = vmatprep.subr.mxu0 0.0
    %52 = vmatpush1.msra.mxu0 0.0
    %53 = vmatprep.subr.mxu0 0.0
    %54 = vmatpush1.msra.mxu0 0.0
    %55 = vmatprep.subr.mxu0 0.0
    %56 = vmatpush1.msra.mxu0 0.0
    %57 = vmatprep.subr.mxu0 0.0
    %58 = vmatpush1.msra.mxu0 0.0
    %59 = vmatprep.subr.mxu0 0.0
    %60 = vmatpush1.msra.mxu0 0.0
    %61 = vmatprep.subr.mxu0 0.0
    %62 = vmatpush1.msra.mxu0 0.0
    %63 = vmatprep.subr.mxu0 0.0
    %64 = vmatpush1.msra.mxu0 0.0
    %65 = vmatprep.subr.mxu0 0.0
    %66 = vmatpush1.msra.mxu0 0.0
    %67 = vmatprep.subr.mxu0 0.0
    %68 = vmatpush1.msra.mxu0 0.0
    %69 = vmatprep.subr.mxu0 0.0
    %70 = vmatpush1.msra.mxu0 0.0
    %71 = vmatprep.subr.mxu0 0.0
    %72 = vmatpush1.msra.mxu0 0.0
    %73 = vmatprep.subr.mxu0 0.0
    %74 = vmatpush1.msra.mxu0 0.0
    %75 = vmatprep.subr.mxu0 0.0
    %76 = vmatpush1.msra.mxu0 0.0
    %77 = vmatprep.subr.mxu0 0.0
    %78 = vmatpush1.msra.mxu0 0.0
    %79 = vmatprep.subr.mxu0 0.0
    %80 = vmatpush1.msra.mxu0 0.0
    %81 = vmatprep.subr.mxu0 0.0
    %82 = vmatpush1.msra.mxu0 0.0
    %83 = vmatprep.subr.mxu0 0.0
    %84 = vmatpush1.msra.mxu0 0.0
    %85 = vmatprep.subr.mxu0 0.0
    %86 = vmatpush1.msra.mxu0 0.0
    %87 = vmatprep.subr.mxu0 0.0
    %88 = vmatpush1.msra.mxu0 0.0
    %89 = vmatprep.subr.mxu0 0.0
    %90 = vmatpush1.msra.mxu0 0.0
    %91 = vmatprep.subr.mxu0 0.0
    %92 = vmatpush1.msra.mxu0 0.0
    %93 = vmatprep.mubr.f32.mxu0 0.0
    %94 = vmatmul.mubr.f32.gmra.mrb[0].mxu0 %v27
    %v95 = vpop.f32.mrb[0].mxu0
    %v96 = vadd.f32 %v23, %v95
    %v97 = vpop.f32.mrb[0].mxu0
    %98 = vdwg.mxu0
    %vm99 = vcmask 64512
    %v100 = vsel %vm99, %v96, -inf
    %101 = vmax.xlane.f32.xlu0 %v100
    %v102 = vpop.xlane.xlu0 %101
    %v103 = vsub.f32 %v96, %v102
    %v104 = vmul.f32 %v103, 1.442695
    %v105 = vpow.pop %v104
    %v106 = vsel %vm99, %v105, 0.0
    %107 = vadd.xlane.f32.xlu0 %v106
    %v108 = vpop.xlane.xlu0 %107
    %v109 = vrcp.pop %v108
    %v110 = vmul.f32 %v105, %v109
    %111 = vst.msk [vmem:[#allocation2] sm:$0xff] %vm99, %v110
    // Predicated region
    $region14: #{tpu_custom_call.1} parent=1 // pred_check
      _
    $region15: #{tpu_custom_call.1} parent=1 // pred_check_branch
      %113 = sbr.rel (0) target = $region17
    $region16: #{tpu_custom_call.1} parent=1 // pred_region
      %s115 = ssub.s32 128, 128
      %116 = vsyncadd [#allocation3], %s115
      %s118 = sshll.u32 [#allocation2], 4
      %s119 = int_to_ptr.vmem [resolvable:$true] %s118
      %121 = dma.vmem_to_hbm [thread:$0]  %s119, 128, %s3, [#allocation3]
    $region17: #{tpu_custom_call.1} parent=1 // pred_fallthru
      _
    // Predicated region
    $region18: #{tpu_custom_call.1} parent=1 // pred_check
      _
    $region19: #{tpu_custom_call.1} parent=1 // pred_check_branch
      %123 = sbr.rel (0) target = $region21
    $region20: #{tpu_custom_call.1} parent=1 // pred_region
      %124 = dma.done [#allocation3], 128
    $region21: #{tpu_custom_call.1} parent=1 // pred_fallthru
      _
    %125 = vsyncpa [#allocation3], 1

</llo_original>
